<compile_context>
chip_gen: v5e
topology: v5e:2x2
jax: 0.10.0
libtpu: 0.0.40
codegen_flags: <defaults>
</compile_context>

<pallas_src>
import functools

import numpy as np
import jax
import jax.numpy as jnp
from jax.experimental import pallas as pl
from jax.experimental.pallas import tpu as pltpu


def _round_up(x, m):
    return ((x + m - 1) // m) * m


# ---------------------------------------------------------------------------
# Kernel 1: all-pairs squared-distance matrix on the MXU.
# ---------------------------------------------------------------------------
def _pairwise_sqdist_kernel(emb_ref, d2_ref):
    e = emb_ref[...]                                               # (B_pad, D_pad) f32
    g = jnp.dot(e, e.T, preferred_element_type=jnp.float32)        # (B_pad, B_pad) Gram

    # Row/column squared norms from diag(G) via an iota mask (avoids any
    # (B,1) <-> (1,B) transpose/relayout inside the kernel).
    r = jax.lax.broadcasted_iota(jnp.int32, g.shape, 0)
    c = jax.lax.broadcasted_iota(jnp.int32, g.shape, 1)
    gd = g * (r == c).astype(jnp.float32)
    sq_col = jnp.sum(gd, axis=1, keepdims=True)                    # (B_pad, 1)  |e_i|^2
    sq_row = jnp.sum(gd, axis=0, keepdims=True)                    # (1, B_pad)  |e_j|^2

    d2_ref[...] = jnp.maximum(sq_col + sq_row - 2.0 * g, 0.0)


def _pairwise_sqdist(emb_p):
    b_pad, d_pad = emb_p.shape
    return pl.pallas_call(
        _pairwise_sqdist_kernel,
        out_shape=jax.ShapeDtypeStruct((b_pad, b_pad), jnp.float32),
        grid=(1,),
        in_specs=[pl.BlockSpec((b_pad, d_pad), lambda i: (0, 0))],
        out_specs=pl.BlockSpec((b_pad, b_pad), lambda i: (0, 0)),
        compiler_params=pltpu.CompilerParams(dimension_semantics=("arbitrary",)),
    )(emb_p)


# ---------------------------------------------------------------------------
# Kernel 2: tiled triplet hinge.  One grid step = TT triplets.
# ---------------------------------------------------------------------------
def _triplet_hinge_kernel(margin, t_total, tt, tri_ref, d2_ref, out_ref):
    i = pl.program_id(0)

    d2 = d2_ref[...]                                               # (B_pad, B_pad), resident
    b_pad = d2.shape[0]

    a_col = tri_ref[:, 0:1]                                        # (TT, 1) int32
    p_col = tri_ref[:, 1:2]
    n_col = tri_ref[:, 2:3]

    lane_b = jax.lax.broadcasted_iota(jnp.int32, (tt, b_pad), 1)
    oh_a = (a_col == lane_b).astype(jnp.float32)                   # (TT, B_pad) one-hots
    oh_p = (p_col == lane_b).astype(jnp.float32)
    oh_n = (n_col == lane_b).astype(jnp.float32)

    # rows_a[t, :] = D2[a_t, :]  -- one MXU matmul gathers every anchor row.
    rows_a = jnp.dot(oh_a, d2, preferred_element_type=jnp.float32)  # (TT, B_pad)

    d_ap = jnp.sum(rows_a * oh_p, axis=-1, keepdims=True)          # (TT, 1) = D2[a, p]
    d_an = jnp.sum(rows_a * oh_n, axis=-1, keepdims=True)          # (TT, 1) = D2[a, n]

    loss = jnp.maximum(d_ap - d_an + margin, 0.0)                  # F.relu(ap - an + margin)

    # Mask the zero-padded tail of the last triplet tile.
    t_idx = i * tt + jax.lax.broadcasted_iota(jnp.int32, (tt, 1), 0)
    loss = jnp.where(t_idx < t_total, loss, 0.0)

    out_ref[...] = jnp.sum(loss, axis=0, keepdims=True).reshape(1, 1, 1)


def online_triplet_loss(embeddings, triplets, margin):
    """Returns (losses.mean(), len(triplets)) exactly like the PyTorch module."""
    B, D = embeddings.shape
    T = int(triplets.shape[0])
    if T == 0:
        # torch.mean of an empty tensor is NaN; keep those semantics.
        return jnp.float32(jnp.nan), 0

    # Sublane/lane-friendly padding of the embeddings (zero rows/cols are never
    # selected by valid triplets, so they cannot change the result).
    B_pad = _round_up(B, 8)
    D_pad = _round_up(D, 128)
    emb_p = embeddings.astype(jnp.float32)
    if (B_pad, D_pad) != (B, D):
        emb_p = jnp.pad(emb_p, ((0, B_pad - B), (0, D_pad - D)))

    d2 = _pairwise_sqdist(emb_p)                                   # (B_pad, B_pad)

    # Block the triplet axis.
    TT = max(8, min(512, pl.next_power_of_2(T)))
    num_tiles = pl.cdiv(T, TT)
    T_pad = num_tiles * TT
    tri = jnp.asarray(triplets, dtype=jnp.int32)
    if T_pad != T:
        tri = jnp.pad(tri, ((0, T_pad - T), (0, 0)))               # padded rows masked in-kernel

    kernel = functools.partial(_triplet_hinge_kernel, float(margin), T, TT)
    partials = pl.pallas_call(
        kernel,
        out_shape=jax.ShapeDtypeStruct((num_tiles, 1, 1), jnp.float32),
        grid=(num_tiles,),
        in_specs=[
            pl.BlockSpec((TT, 3), lambda i: (i, 0)),               # triplet tile (VMEM)
            pl.BlockSpec((B_pad, B_pad), lambda i: (0, 0)),        # D2, resident
        ],
        out_specs=pl.BlockSpec((1, 1, 1), lambda i: (i, 0, 0)),    # per-tile partial sum
        compiler_params=pltpu.CompilerParams(
            dimension_semantics=("parallel",)),                    # v7x: tiles split across TCs
    )(tri, d2)

    mean_loss = jnp.sum(partials) / jnp.float32(T)                 # tiny final reduce (num_tiles,)
    return mean_loss, T


# ---------------------------------------------------------------------------
# Deterministic "AllTripletSelector"-style triplet selection (host-side glue).
# TODO(synk): the abstract `triplet_selector` object has no Pallas equivalent;
#             an all-valid-triplets selector is reproduced here in numpy.
# ---------------------------------------------------------------------------
def get_all_triplets(labels):
    labels = np.asarray(labels)
    triplets = []
    for label in np.unique(labels):
        label_mask = labels == label
        label_idx = np.where(label_mask)[0]
        if len(label_idx) < 2:
            continue
        neg_idx = np.where(~label_mask)[0]
        for a in label_idx:
            for p in label_idx:
                if a == p:
                    continue
                for n in neg_idx:
                    triplets.append([a, p, n])
    return np.asarray(triplets, dtype=np.int32)


def reference_loss(embeddings, triplets, margin):
    ap = jnp.sum((embeddings[triplets[:, 0]] - embeddings[triplets[:, 1]]) ** 2, axis=1)
    an = jnp.sum((embeddings[triplets[:, 0]] - embeddings[triplets[:, 2]]) ** 2, axis=1)
    losses = jnp.maximum(ap - an + margin, 0.0)
    return jnp.mean(losses)


if __name__ == "__main__":
    B, D = 8, 128        # batch of 8 embeddings of dim 128
    margin = 1.0

    key = jax.random.PRNGKey(0)
    embeddings = jax.random.normal(key, (B, D), dtype=jnp.float32)
    target = np.array([0, 0, 0, 0, 1, 1, 1, 1], dtype=np.int32)   # 2 classes x 4

    triplets = jnp.asarray(get_all_triplets(target))              # (96, 3) int32

    mean_loss, n_triplets = online_triplet_loss(embeddings, triplets, margin)
    mean_loss = jax.block_until_ready(mean_loss)

    ref = jax.block_until_ready(reference_loss(embeddings, triplets, margin))
    assert n_triplets == triplets.shape[0]
    np.testing.assert_allclose(np.asarray(mean_loss), np.asarray(ref), rtol=1e-4, atol=1e-4)

    print("KERNEL_OK")
</pallas_src>

<mosaic_0001>
module attributes {stable_mosaic.version = 11 : i64} {
  func.func @_pairwise_sqdist_kernel(%arg0: i32, %arg1: memref<8x128xf32, #tpu.memory_space<vmem>>, %arg2: memref<8x8xf32, #tpu.memory_space<vmem>>) attributes {dimension_semantics = [#tpu.dimension_semantics<arbitrary>], iteration_bounds = array<i64: 1>, scalar_prefetch = 0 : i64, scratch_operands = 0 : i64, tpu.core_type = #tpu.core_type<tc>, window_params = [{pipeline_mode = #tpu.pipeline_mode<synchronous>, transform_indices = @transform_0, window_bounds = array<i64: 8, 128>}, {pipeline_mode = #tpu.pipeline_mode<synchronous>, transform_indices = @transform_1, window_bounds = array<i64: 8, 8>}]} {
    %c0 = arith.constant 0 : index
    %c0_0 = arith.constant 0 : index
    %0 = vector.load %arg1[%c0, %c0_0] : memref<8x128xf32, #tpu.memory_space<vmem>>, vector<8x128xf32>
    %1 = tpu.transpose %0, [1, 0] : vector<8x128xf32> -> vector<128x8xf32>
    %cst = arith.constant dense<0.000000e+00> : vector<8x8xf32>
    %2 = tpu.matmul %0, %1, %cst {dimension_numbers = #tpu.dot_dimension_numbers<[1], [0], [0], [1], [0, 0, 1, 1], [], []>} : vector<8x128xf32>, vector<128x8xf32>, vector<8x8xf32> -> vector<8x8xf32>
    %3 = tpu.iota {dimensions = array<i32: 0>} : vector<8x8xi32>
    %4 = tpu.iota {dimensions = array<i32: 1>} : vector<8x8xi32>
    %5 = arith.cmpi eq, %3, %4 : vector<8x8xi32>
    %6 = arith.extui %5 : vector<8x8xi1> to vector<8x8xi32>
    %7 = arith.sitofp %6 : vector<8x8xi32> to vector<8x8xf32>
    %8 = arith.mulf %2, %7 : vector<8x8xf32>
    %cst_1 = arith.constant dense<0.000000e+00> : vector<8xf32>
    %9 = vector.multi_reduction <add>, %8, %cst_1 [1] : vector<8x8xf32> to vector<8xf32>
    %10 = vector.shape_cast %9 : vector<8xf32> to vector<8x1xf32>
    %cst_2 = arith.constant dense<0.000000e+00> : vector<8xf32>
    %11 = vector.multi_reduction <add>, %8, %cst_2 [0] : vector<8x8xf32> to vector<8xf32>
    %12 = vector.shape_cast %11 : vector<8xf32> to vector<1x8xf32>
    %13 = vector.broadcast %10 : vector<8x1xf32> to vector<8x8xf32>
    %14 = vector.broadcast %12 : vector<1x8xf32> to vector<8x8xf32>
    %15 = arith.addf %13, %14 : vector<8x8xf32>
    %cst_3 = arith.constant 2.000000e+00 : f32
    %16 = vector.broadcast %cst_3 : f32 to vector<8x8xf32>
    %17 = arith.mulf %16, %2 : vector<8x8xf32>
    %18 = arith.subf %15, %17 : vector<8x8xf32>
    %cst_4 = arith.constant 0.000000e+00 : f32
    %19 = vector.broadcast %cst_4 : f32 to vector<8x8xf32>
    %20 = arith.maximumf %18, %19 : vector<8x8xf32>
    %c0_5 = arith.constant 0 : index
    %c0_6 = arith.constant 0 : index
    %21 = vector.load %arg2[%c0_5, %c0_6] : memref<8x8xf32, #tpu.memory_space<vmem>>, vector<8x8xf32>
    tpu.vector_store %arg2[%c0_5, %c0_6], %20 {strides = array<i32>} : memref<8x8xf32, #tpu.memory_space<vmem>>, vector<8x8xf32>,
    return
  }
  func.func @transform_0(%arg0: i32) -> (i32, i32) {
    %c0_i32 = arith.constant 0 : i32
    %c0_i32_0 = arith.constant 0 : i32
    %c0_i32_1 = arith.constant 0 : i32
    return %c0_i32, %c0_i32_0 : i32, i32
  }
  func.func @transform_1(%arg0: i32) -> (i32, i32) {
    %c0_i32 = arith.constant 0 : i32
    %c0_i32_0 = arith.constant 0 : i32
    %c0_i32_1 = arith.constant 0 : i32
    return %c0_i32, %c0_i32_0 : i32, i32
  }
}

</mosaic_0001>

<llo_original>
// kernel: tpu_custom_call.1
$region0: #{tpu_custom_call.1}
  #allocation0 [shape = 'u32[]', space=smem, size = 0x4, offset = 0x4, fixed_abs, tag = 'smem constant byte address 0x4 - core index']
  #allocation1 [shape = 'u32[72,128]{1,0:T(1,128)}', space=vmem, size = 0x9000, scoped, tag = 'internal scratch']
  %s0 = inlined_call_operand.hbm [shape: f32[8,128], index: 0, kind: input, shape index: {}]
  %s1 = inlined_call_operand.hbm [shape: f32[8,8], index: 1, kind: output, shape index: {}]
  %s2 = sld [smem:[#allocation0]]
  $region18: #{tpu_custom_call.1} parent=0
    _
  %s4 = ssub.s32 1, %s2
  %s5 = scalar_select 0, %s4, %s2
  $region1: #{tpu_custom_call.1} parent=0
    #allocation2 [shape = 'u8[4096]{0}', space=vmem, size = 0x1000, scoped, tag = 'input window, operand 0, single buffered']
    #allocation3 [shape = 's32[1]{0}', space=sflag, size = 0x4, scoped, tag = 'scoped memory for tpu_custom_call.1']
    #allocation4 [shape = 's32[1]{0}', space=sflag, size = 0x4, scoped, tag = 'scoped memory for tpu_custom_call.1']
    #allocation5 [shape = 'u8[4096]{0}', space=vmem, size = 0x1000, scoped, tag = 'output window, operand 0, single buffered']
    %6 = vsyncpa [#allocation3], 0
    %7 = vsyncpa [#allocation4], 0
    // Predicated region
    $region2: #{tpu_custom_call.1} parent=1 // pred_check
      _
    $region3: #{tpu_custom_call.1} parent=1 // pred_check_branch
      %9 = sbr.rel (0) target = $region5
    $region4: #{tpu_custom_call.1} parent=1 // pred_region
      %11 = vsyncadd [#allocation3], 0
      %s13 = sshll.u32 %s0, 4
      %s14 = int_to_ptr.hbm [resolvable:$true] %s13
      %s15 = sshll.u32 [#allocation2], 4
      %s16 = int_to_ptr.vmem [resolvable:$true] %s15
      %18 = dma.hbm_to_vmem [thread:$0]  %s14, 128, %s16, [#allocation3]
    $region5: #{tpu_custom_call.1} parent=1 // pred_fallthru
      _
    // Predicated region
    $region6: #{tpu_custom_call.1} parent=1 // pred_check
      _
    $region7: #{tpu_custom_call.1} parent=1 // pred_check_branch
      %20 = sbr.rel (0) target = $region9
    $region8: #{tpu_custom_call.1} parent=1 // pred_region
      %22 = dma.done [#allocation3], 128
    $region9: #{tpu_custom_call.1} parent=1 // pred_fallthru
      _
    %v23 = vld [vmem:[#allocation2] sm:$0xff]
    %24 = vmatpush.xpose.msra.mxu0 0.0
    %25 = vmatpush.xpose.msra.mxu0 0.0
    %26 = vmatpush.xpose.msra.mxu0 0.0
    %27 = vmatpush.xpose.msra.mxu0 0.0
    %28 = vmatpush.xpose.msra.mxu0 0.0
    %29 = vmatpush.xpose.msra.mxu0 0.0
    %30 = vmatpush.xpose.msra.mxu0 0.0
    %31 = vmatpush.xpose.msra.mxu0 0.0
    %32 = vmatpush.xpose.msra.mxu0 0.0
    %33 = vmatpush.xpose.msra.mxu0 0.0
    %34 = vmatpush.xpose.msra.mxu0 0.0
    %35 = vmatpush.xpose.msra.mxu0 0.0
    %36 = vmatpush.xpose.msra.mxu0 0.0
    %37 = vmatpush.xpose.msra.mxu0 0.0
    %38 = vmatpush.xpose.msra.mxu0 0.0
    %39 = vmatpush.xpose.msra.mxu0 %v23
    %40 = vmatmul.f32.gmra.mxu0 %v23
    %v41 = vpop.f32.mrf.mxu0
    %v42 = vadd.f32 0.0, %v41
    %43 = vdwg.mxu0
    %v44 = vlaneseq
    %v45 = vshrl.u32 %v44, 7
    %v46 = vlaneseq
    %v47 = vand.u32 %v46, 127
    %vm48 = vcmp.eq.s32.totalorder %v45, %v47
    %v49 = vsel %vm48, 1, 0
    %v50 = vcvt.s32.f32 %v49
    %v51 = vmul.f32 %v42, %v50
    %vm52 = vcmask 64512
    %v53 = vsel %vm52, %v51, 0.0
    %54 = vadd.xlane.f32.xlu0 %v53
    %v55 = vpop.xlane.xlu0 %54
    %v56 = vrot.slane %v53, 4
    %v57 = vadd.f32 %v53, %v56
    %v58 = vrot.slane %v57, 2
    %v59 = vadd.f32 %v57, %v58
    %v60 = vrot.slane %v59, 1
    %v61 = vadd.f32 %v59, %v60
    %v62 = vadd.f32 %v55, %v61
    %v63 = vmul.f32 %v42, 2.0
    %v64 = vsub.f32 %v62, %v63
    %v65 = vmax.f32 %v64, 0.0
    %66 = vst.msk [vmem:[#allocation5] sm:$0xff] %vm52, %v65
    // Predicated region
    $region10: #{tpu_custom_call.1} parent=1 // pred_check
      _
    $region11: #{tpu_custom_call.1} parent=1 // pred_check_branch
      %68 = sbr.rel (0) target = $region13
    $region12: #{tpu_custom_call.1} parent=1 // pred_region
      %70 = vsyncadd [#allocation4], 0
      %s72 = sshll.u32 [#allocation5], 4
      %s73 = int_to_ptr.vmem [resolvable:$true] %s72
      %s74 = sshll.u32 %s1, 4
      %s75 = int_to_ptr.hbm [resolvable:$true] %s74
      %77 = dma.vmem_to_hbm [thread:$0]  %s73, 128, %s75, [#allocation4]
    $region13: #{tpu_custom_call.1} parent=1 // pred_fallthru
      _
    // Predicated region
    $region14: #{tpu_custom_call.1} parent=1 // pred_check
      _
    $region15: #{tpu_custom_call.1} parent=1 // pred_check_branch
      %79 = sbr.rel (0) target = $region17
    $region16: #{tpu_custom_call.1} parent=1 // pred_region
      %81 = dma.done [#allocation4], 128
    $region17: #{tpu_custom_call.1} parent=1 // pred_fallthru
      _
    %82 = vsyncpa [#allocation3], 1
    %83 = vsyncpa [#allocation4], 1

</llo_original>
